<compile_context>
chip_gen: v6e
topology: v6e:2x2x1
jax: 0.10.0
libtpu: 0.0.40
codegen_flags: <defaults>
</compile_context>

<pallas_src>
import jax
import jax.numpy as jnp
from jax import lax
from jax.experimental import pallas as pl
from jax.experimental.pallas import tpu as pltpu


_LANE = 128                      # lane width (last dim)
_SUBLANE = 8                     # f32 sublane granularity (second-to-last dim)
_VMEM_BUDGET = 24 * 1024 * 1024  # conservative; leaves headroom on v7x (64 MiB VMEM)


def _round_up(x, m):
    return ((x + m - 1) // m) * m


def _pick_tile(dim_padded, target):
    """Largest multiple of 128 <= target that divides dim_padded (a multiple of 128)."""
    best = _LANE
    t = _LANE
    while t <= min(target, dim_padded):
        if dim_padded % t == 0:
            best = t
        t += _LANE
    return best


def _node_embedding_kernel(x_ref, w_ref, b_ref, o_ref, acc_ref):
    """Grid = (N tiles, M tiles, K tiles); K (reduction) is the innermost axis."""
    k = pl.program_id(2)

    @pl.when(k == 0)
    def _init():
        acc_ref[...] = jnp.zeros_like(acc_ref)

    acc_ref[...] += jnp.dot(x_ref[...], w_ref[...],
                            preferred_element_type=jnp.float32)

    @pl.when(k == pl.num_programs(2) - 1)
    def _finalize():
        o_ref[...] = (acc_ref[...] + b_ref[...].astype(jnp.float32)).astype(o_ref.dtype)


def node_embedding(node_feats, weight, bias, *, tile_n=None, tile_k=None, tile_m=None):
    """node_feats: (N, in_feats); weight: (in_feats, out_feats) (transposed vs
    PyTorch's (out, in) storage); bias: (out_feats,). Returns (N, out_feats).

    Note: for toy problems the us-scale grid/launch overhead dominates and a
    plain XLA dot is preferable at the call site; this kernel targets
    realistically sized graphs.
    """
    n, in_feats = node_feats.shape
    kw, out_feats = weight.shape
    assert kw == in_feats and bias.shape == (out_feats,)
    dtype = node_feats.dtype
    x_item = jnp.dtype(dtype).itemsize
    w_item = jnp.dtype(weight.dtype).itemsize
    b_item = jnp.dtype(bias.dtype).itemsize

    # ---- feature axes: lane-dense (multiple of 128) padding + tile choice ----
    k_pad = _round_up(in_feats, _LANE)
    m_pad = _round_up(out_feats, _LANE)
    tile_k = _pick_tile(k_pad, 512) if tile_k is None else min(_round_up(tile_k, _LANE), k_pad)
    tile_m = _pick_tile(m_pad, 512) if tile_m is None else min(_round_up(tile_m, _LANE), m_pad)
    k_pad = _round_up(k_pad, tile_k)
    m_pad = _round_up(m_pad, tile_m)

    # ---- node axis: fixed pipeline-friendly tile, multiple of 8 sublanes ----
    if tile_n is None:
        tile_n = 1024 if dtype == jnp.bfloat16 else 512
    tile_n = min(_round_up(tile_n, _SUBLANE), _round_up(n, _SUBLANE))

    def vmem_needed(tn):
        return (2 * tn * tile_k * x_item           # x blocks (double buffered)
                + 2 * tile_k * tile_m * w_item     # weight blocks (worst case 2 bufs)
                + 2 * _SUBLANE * tile_m * b_item   # bias (sublane padded, 2 bufs)
                + 2 * tn * tile_m * x_item         # output blocks
                + tn * tile_m * 4)                 # f32 accumulator scratch

    while tile_n > _SUBLANE and vmem_needed(tile_n) > _VMEM_BUDGET:
        tile_n = max(_SUBLANE, _round_up(tile_n // 2, _SUBLANE))

    n_pad = _round_up(n, tile_n)
    grid_n, grid_m, grid_k = n_pad // tile_n, m_pad // tile_m, k_pad // tile_k

    # ---- wrapper-side zero padding: full last tile, lane-dense features ----
    x_p = jnp.pad(node_feats, ((0, n_pad - n), (0, k_pad - in_feats)))
    w_p = jnp.pad(weight, ((0, k_pad - in_feats), (0, m_pad - out_feats)))
    b_p = jnp.pad(bias.reshape(1, out_feats), ((0, 0), (0, m_pad - out_feats)))

    vmem_limit = int(min(48 * 1024 * 1024,
                         max(32 * 1024 * 1024, 2 * vmem_needed(tile_n))))

    cost = pl.CostEstimate(
        flops=int(2 * n_pad * k_pad * m_pad),
        transcendentals=0,
        bytes_accessed=int(x_p.size * x_item + w_p.size * w_item
                           + b_p.size * b_item + n_pad * m_pad * x_item),
    )

    def run(use_buffer_hints):
        # Single-buffer operands whose block index never changes (invariant
        # weight / bias) -> halves their VMEM footprint vs default 2-deep buffers.
        w_kwargs, b_kwargs = {}, {}
        if use_buffer_hints:
            if grid_k == 1 and grid_m == 1:
                w_kwargs = dict(pipeline_mode=pl.Buffered(1))
            if grid_m == 1:
                b_kwargs = dict(pipeline_mode=pl.Buffered(1))
        return pl.pallas_call(
            _node_embedding_kernel,
            out_shape=jax.ShapeDtypeStruct((n_pad, m_pad), dtype),
            grid=(grid_n, grid_m, grid_k),
            in_specs=[
                pl.BlockSpec((tile_n, tile_k), lambda i, j, k: (i, k)),
                pl.BlockSpec((tile_k, tile_m), lambda i, j, k: (k, j), **w_kwargs),
                pl.BlockSpec((1, tile_m), lambda i, j, k: (0, j), **b_kwargs),
            ],
            out_specs=pl.BlockSpec((tile_n, tile_m), lambda i, j, k: (i, j)),
            scratch_shapes=[pltpu.VMEM((tile_n, tile_m), jnp.float32)],
            compiler_params=pltpu.CompilerParams(
                dimension_semantics=("parallel", "parallel", "arbitrary"),
                vmem_limit_bytes=vmem_limit,
            ),
            cost_estimate=cost,
        )(x_p, w_p, b_p)

    try:
        out_p = run(True)
    except Exception:
        # Some JAX/libtpu combos may reject the Buffered(1) pipeline hint;
        # the kernel is identical without it (just uses a bit more VMEM).
        out_p = run(False)

    return out_p[:n, :out_feats]


if __name__ == "__main__":
    key = jax.random.PRNGKey(0)
    k_x1, k_w1, k_b1, k_x2, k_w2, k_b2 = jax.random.split(key, 6)

    # Case 1: small graph, non-lane-aligned feature dims, non-tile-aligned N.
    n1, in1, out1 = 200, 32, 64
    x1 = jax.random.normal(k_x1, (n1, in1), dtype=jnp.float32)
    bnd1 = 1.0 / (in1 ** 0.5)
    w1 = jax.random.uniform(k_w1, (in1, out1), jnp.float32, -bnd1, bnd1)  # (in, out)
    b1 = jax.random.uniform(k_b1, (out1,), jnp.float32, -bnd1, bnd1)

    y1 = jax.block_until_ready(node_embedding(x1, w1, b1))
    ref1 = jnp.dot(x1, w1, precision=lax.Precision.HIGHEST) + b1
    assert y1.shape == (n1, out1)
    assert jnp.allclose(y1, ref1, atol=1e-4, rtol=1e-4), "case 1 mismatch"

    # Case 2: explicit small tiles -> multi-step N/M/K grid; exercises the f32
    # accumulator + pl.when init/finalize path and the software pipeline.
    n2, in2, out2 = 96, 384, 256
    x2 = jax.random.normal(k_x2, (n2, in2), dtype=jnp.float32)
    bnd2 = 1.0 / (in2 ** 0.5)
    w2 = jax.random.uniform(k_w2, (in2, out2), jnp.float32, -bnd2, bnd2)
    b2 = jax.random.uniform(k_b2, (out2,), jnp.float32, -bnd2, bnd2)

    y2 = jax.block_until_ready(
        node_embedding(x2, w2, b2, tile_n=32, tile_m=128, tile_k=128))
    ref2 = jnp.dot(x2, w2, precision=lax.Precision.HIGHEST) + b2
    assert y2.shape == (n2, out2)
    assert jnp.allclose(y2, ref2, atol=1e-4, rtol=1e-4), "case 2 mismatch"

    print("KERNEL_OK")
</pallas_src>

<mosaic_0001>
module attributes {stable_mosaic.version = 11 : i64} {
  func.func @_node_embedding_kernel(%arg0: i32, %arg1: i32, %arg2: i32, %arg3: memref<200x128xf32, #tpu.memory_space<vmem>>, %arg4: memref<128x128xf32, #tpu.memory_space<vmem>>, %arg5: memref<1x128xf32, #tpu.memory_space<vmem>>, %arg6: memref<200x128xf32, #tpu.memory_space<vmem>>, %arg7: memref<200x128xf32, #tpu.memory_space<vmem>>) attributes {dimension_semantics = [#tpu.dimension_semantics<parallel>, #tpu.dimension_semantics<parallel>, #tpu.dimension_semantics<arbitrary>], iteration_bounds = array<i64: 1, 1, 1>, scalar_prefetch = 0 : i64, scratch_operands = 1 : i64, tpu.core_type = #tpu.core_type<tc>, window_params = [{transform_indices = @transform_0, window_bounds = array<i64: 200, 128>}, {pipeline_mode = #tpu.pipeline_mode<synchronous>, transform_indices = @transform_1, window_bounds = array<i64: 128, 128>}, {pipeline_mode = #tpu.pipeline_mode<synchronous>, transform_indices = @transform_2, window_bounds = array<i64: 1, 128>}, {transform_indices = @transform_3, window_bounds = array<i64: 200, 128>}]} {
    %c0_i32 = arith.constant 0 : i32
    %0 = arith.cmpi eq, %arg2, %c0_i32 : i32
    %1 = arith.extui %0 : i1 to i32
    %c0_i32_0 = arith.constant 0 : i32
    %2 = arith.cmpi ne, %1, %c0_i32_0 : i32
    scf.if %2 {
      %cst_10 = arith.constant 0.000000e+00 : f32
      %12 = vector.broadcast %cst_10 : f32 to vector<200x128xf32>
      %c0_11 = arith.constant 0 : index
      %c0_12 = arith.constant 0 : index
      %13 = vector.load %arg7[%c0_11, %c0_12] : memref<200x128xf32, #tpu.memory_space<vmem>>, vector<200x128xf32>
      tpu.vector_store %arg7[%c0_11, %c0_12], %12 {strides = array<i32>} : memref<200x128xf32, #tpu.memory_space<vmem>>, vector<200x128xf32>,
    } else {
    }
    %c0 = arith.constant 0 : index
    %c0_1 = arith.constant 0 : index
    %3 = vector.load %arg7[%c0, %c0_1] : memref<200x128xf32, #tpu.memory_space<vmem>>, vector<200x128xf32>
    %c0_2 = arith.constant 0 : index
    %c0_3 = arith.constant 0 : index
    %4 = vector.load %arg3[%c0_2, %c0_3] : memref<200x128xf32, #tpu.memory_space<vmem>>, vector<200x128xf32>
    %c0_4 = arith.constant 0 : index
    %c0_5 = arith.constant 0 : index
    %5 = vector.load %arg4[%c0_4, %c0_5] : memref<128x128xf32, #tpu.memory_space<vmem>>, vector<128x128xf32>
    %cst = arith.constant dense<0.000000e+00> : vector<200x128xf32>
    %6 = tpu.matmul %4, %5, %cst {dimension_numbers = #tpu.dot_dimension_numbers<[1], [0], [0], [1], [0, 0, 1, 1], [], []>} : vector<200x128xf32>, vector<128x128xf32>, vector<200x128xf32> -> vector<200x128xf32>
    %7 = arith.addf %3, %6 : vector<200x128xf32>
    %c0_6 = arith.constant 0 : index
    %c0_7 = arith.constant 0 : index
    %8 = vector.load %arg7[%c0_6, %c0_7] : memref<200x128xf32, #tpu.memory_space<vmem>>, vector<200x128xf32>
    tpu.vector_store %arg7[%c0_6, %c0_7], %7 {strides = array<i32>} : memref<200x128xf32, #tpu.memory_space<vmem>>, vector<200x128xf32>,
    %c0_i32_8 = arith.constant 0 : i32
    %9 = arith.cmpi eq, %arg2, %c0_i32_8 : i32
    %10 = arith.extui %9 : i1 to i32
    %c0_i32_9 = arith.constant 0 : i32
    %11 = arith.cmpi ne, %10, %c0_i32_9 : i32
    scf.if %11 {
      %c0_10 = arith.constant 0 : index
      %c0_11 = arith.constant 0 : index
      %12 = vector.load %arg7[%c0_10, %c0_11] : memref<200x128xf32, #tpu.memory_space<vmem>>, vector<200x128xf32>
      %c0_12 = arith.constant 0 : index
      %c0_13 = arith.constant 0 : index
      %13 = vector.load %arg5[%c0_12, %c0_13] : memref<1x128xf32, #tpu.memory_space<vmem>>, vector<1x128xf32>
      %14 = vector.broadcast %13 : vector<1x128xf32> to vector<200x128xf32>
      %15 = arith.addf %12, %14 : vector<200x128xf32>
      %c0_14 = arith.constant 0 : index
      %c0_15 = arith.constant 0 : index
      %16 = vector.load %arg6[%c0_14, %c0_15] : memref<200x128xf32, #tpu.memory_space<vmem>>, vector<200x128xf32>
      tpu.vector_store %arg6[%c0_14, %c0_15], %15 {strides = array<i32>} : memref<200x128xf32, #tpu.memory_space<vmem>>, vector<200x128xf32>,
    } else {
    }
    return
  }
  func.func @transform_0(%arg0: i32, %arg1: i32, %arg2: i32) -> (i32, i32) {
    %c0_i32 = arith.constant 0 : i32
    return %arg0, %arg2 : i32, i32
  }
  func.func @transform_1(%arg0: i32, %arg1: i32, %arg2: i32) -> (i32, i32) {
    %c0_i32 = arith.constant 0 : i32
    return %arg2, %arg1 : i32, i32
  }
  func.func @transform_2(%arg0: i32, %arg1: i32, %arg2: i32) -> (i32, i32) {
    %c0_i32 = arith.constant 0 : i32
    %c0_i32_0 = arith.constant 0 : i32
    return %c0_i32, %arg1 : i32, i32
  }
  func.func @transform_3(%arg0: i32, %arg1: i32, %arg2: i32) -> (i32, i32) {
    %c0_i32 = arith.constant 0 : i32
    return %arg0, %arg1 : i32, i32
  }
}

module attributes {stable_mosaic.version = 11 : i64} {
  func.func @_node_embedding_kernel(%arg0: i32, %arg1: i32, %arg2: i32, %arg3: memref<200x128xf32, #tpu.memory_space<vmem>>, %arg4: memref<128x128xf32, #tpu.memory_space<vmem>>, %arg5: memref<1x128xf32, #tpu.memory_space<vmem>>, %arg6: memref<200x128xf32, #tpu.memory_space<vmem>>, %arg7: memref<200x128xf32, #tpu.memory_space<vmem>>) attributes {dimension_semantics = [#tpu.dimension_semantics<parallel>, #tpu.dimension_semantics<parallel>, #tpu.dimension_semantics<arbitrary>], iteration_bounds = array<i64: 1, 1, 1>, scalar_prefetch = 0 : i64, scratch_operands = 1 : i64, tpu.core_type = #tpu.core_type<tc>, window_params = [{transform_indices = @transform_0, window_bounds = array<i64: 200, 128>}, {transform_indices = @transform_1, window_bounds = array<i64: 128, 128>}, {transform_indices = @transform_2, window_bounds = array<i64: 1, 128>}, {transform_indices = @transform_3, window_bounds = array<i64: 200, 128>}]} {
    %c0_i32 = arith.constant 0 : i32
    %0 = arith.cmpi eq, %arg2, %c0_i32 : i32
    %1 = arith.extui %0 : i1 to i32
    %c0_i32_0 = arith.constant 0 : i32
    %2 = arith.cmpi ne, %1, %c0_i32_0 : i32
    scf.if %2 {
      %cst_10 = arith.constant 0.000000e+00 : f32
      %12 = vector.broadcast %cst_10 : f32 to vector<200x128xf32>
      %c0_11 = arith.constant 0 : index
      %c0_12 = arith.constant 0 : index
      %13 = vector.load %arg7[%c0_11, %c0_12] : memref<200x128xf32, #tpu.memory_space<vmem>>, vector<200x128xf32>
      tpu.vector_store %arg7[%c0_11, %c0_12], %12 {strides = array<i32>} : memref<200x128xf32, #tpu.memory_space<vmem>>, vector<200x128xf32>,
    } else {
    }
    %c0 = arith.constant 0 : index
    %c0_1 = arith.constant 0 : index
    %3 = vector.load %arg7[%c0, %c0_1] : memref<200x128xf32, #tpu.memory_space<vmem>>, vector<200x128xf32>
    %c0_2 = arith.constant 0 : index
    %c0_3 = arith.constant 0 : index
    %4 = vector.load %arg3[%c0_2, %c0_3] : memref<200x128xf32, #tpu.memory_space<vmem>>, vector<200x128xf32>
    %c0_4 = arith.constant 0 : index
    %c0_5 = arith.constant 0 : index
    %5 = vector.load %arg4[%c0_4, %c0_5] : memref<128x128xf32, #tpu.memory_space<vmem>>, vector<128x128xf32>
    %cst = arith.constant dense<0.000000e+00> : vector<200x128xf32>
    %6 = tpu.matmul %4, %5, %cst {dimension_numbers = #tpu.dot_dimension_numbers<[1], [0], [0], [1], [0, 0, 1, 1], [], []>} : vector<200x128xf32>, vector<128x128xf32>, vector<200x128xf32> -> vector<200x128xf32>
    %7 = arith.addf %3, %6 : vector<200x128xf32>
    %c0_6 = arith.constant 0 : index
    %c0_7 = arith.constant 0 : index
    %8 = vector.load %arg7[%c0_6, %c0_7] : memref<200x128xf32, #tpu.memory_space<vmem>>, vector<200x128xf32>
    tpu.vector_store %arg7[%c0_6, %c0_7], %7 {strides = array<i32>} : memref<200x128xf32, #tpu.memory_space<vmem>>, vector<200x128xf32>,
    %c0_i32_8 = arith.constant 0 : i32
    %9 = arith.cmpi eq, %arg2, %c0_i32_8 : i32
    %10 = arith.extui %9 : i1 to i32
    %c0_i32_9 = arith.constant 0 : i32
    %11 = arith.cmpi ne, %10, %c0_i32_9 : i32
    scf.if %11 {
      %c0_10 = arith.constant 0 : index
      %c0_11 = arith.constant 0 : index
      %12 = vector.load %arg7[%c0_10, %c0_11] : memref<200x128xf32, #tpu.memory_space<vmem>>, vector<200x128xf32>
      %c0_12 = arith.constant 0 : index
      %c0_13 = arith.constant 0 : index
      %13 = vector.load %arg5[%c0_12, %c0_13] : memref<1x128xf32, #tpu.memory_space<vmem>>, vector<1x128xf32>
      %14 = vector.broadcast %13 : vector<1x128xf32> to vector<200x128xf32>
      %15 = arith.addf %12, %14 : vector<200x128xf32>
      %c0_14 = arith.constant 0 : index
      %c0_15 = arith.constant 0 : index
      %16 = vector.load %arg6[%c0_14, %c0_15] : memref<200x128xf32, #tpu.memory_space<vmem>>, vector<200x128xf32>
      tpu.vector_store %arg6[%c0_14, %c0_15], %15 {strides = array<i32>} : memref<200x128xf32, #tpu.memory_space<vmem>>, vector<200x128xf32>,
    } else {
    }
    return
  }
  func.func @transform_0(%arg0: i32, %arg1: i32, %arg2: i32) -> (i32, i32) {
    %c0_i32 = arith.constant 0 : i32
    return %arg0, %arg2 : i32, i32
  }
  func.func @transform_1(%arg0: i32, %arg1: i32, %arg2: i32) -> (i32, i32) {
    %c0_i32 = arith.constant 0 : i32
    return %arg2, %arg1 : i32, i32
  }
  func.func @transform_2(%arg0: i32, %arg1: i32, %arg2: i32) -> (i32, i32) {
    %c0_i32 = arith.constant 0 : i32
    %c0_i32_0 = arith.constant 0 : i32
    return %c0_i32, %arg1 : i32, i32
  }
  func.func @transform_3(%arg0: i32, %arg1: i32, %arg2: i32) -> (i32, i32) {
    %c0_i32 = arith.constant 0 : i32
    return %arg0, %arg1 : i32, i32
  }
}

</mosaic_0001>

<llo_original>
// kernel: tpu_custom_call.1
$region0: #{tpu_custom_call.1}
  #allocation0 [shape = 'u32[]', space=smem, size = 0x4, offset = 0x4, fixed_abs, tag = 'smem constant byte address 0x4 - core index']
  #allocation1 [shape = 'u32[144,128]{1,0:T(1,128)}', space=vmem, size = 0x12000, scoped, tag = 'internal scratch']
  #allocation2 [shape = 'f32[200,128]{1,0:T(8,128)}', space=vmem, size = 0x19000, scoped, tag = 'scratch operand']
  %s0 = inlined_call_operand.hbm [shape: f32[200,128], index: 0, kind: input, shape index: {}]
  %s1 = inlined_call_operand.hbm [shape: f32[128,128], index: 1, kind: input, shape index: {}]
  %s2 = inlined_call_operand.vmem [shape: f32[1,128], index: 2, kind: input, shape index: {}]
  %s3 = inlined_call_operand.hbm [shape: f32[200,128], index: 3, kind: output, shape index: {}]
  %s4 = sld [smem:[#allocation0]]
  $region38: #{tpu_custom_call.1} parent=0
    _
  %s6 = ssub.s32 1, %s4
  %s7 = scalar_select 0, %s6, %s4
  $region1: #{tpu_custom_call.1} parent=0
    #allocation3 [shape = 'u8[102400]{0}', space=vmem, size = 0x19000, scoped, tag = 'input window, operand 0, single buffered']
    #allocation4 [shape = 's32[1]{0}', space=sflag, size = 0x4, scoped, tag = 'scoped memory for tpu_custom_call.1']
    #allocation5 [shape = 's32[1]{0}', space=sflag, size = 0x4, scoped, tag = 'scoped memory for tpu_custom_call.1']
    #allocation6 [shape = 'u8[65536]{0}', space=vmem, size = 0x10000, scoped, tag = 'input window, operand 1, single buffered']
    #allocation7 [shape = 's32[1]{0}', space=sflag, size = 0x4, scoped, tag = 'scoped memory for tpu_custom_call.1']
    #allocation8 [shape = 'u8[102400]{0}', space=vmem, size = 0x19000, scoped, tag = 'output window, operand 0, single buffered']
    %8 = vsyncpa [#allocation4], 0
    %9 = vsyncpa [#allocation7], 0
    %10 = vsyncpa [#allocation5], 0
    // Predicated region
    $region2: #{tpu_custom_call.1} parent=1 // pred_check
      _
    $region3: #{tpu_custom_call.1} parent=1 // pred_check_branch
      %12 = sbr.rel (0) target = $region5
    $region4: #{tpu_custom_call.1} parent=1 // pred_region
      %s14 = ssub.s32 3200, 3200
      %15 = vsyncadd [#allocation4], %s14
      %s16 = sshll.u32 [#allocation3], 4
      %s17 = int_to_ptr.vmem [resolvable:$true] %s16
      %22 = dma.hbm_to_vmem [thread:$0]  %s0, 3200, %s17, [#allocation4], 128, 128, 8
    $region5: #{tpu_custom_call.1} parent=1 // pred_fallthru
      _
    // Predicated region
    $region6: #{tpu_custom_call.1} parent=1 // pred_check
      _
    $region7: #{tpu_custom_call.1} parent=1 // pred_check_branch
      %24 = sbr.rel (0) target = $region9
    $region8: #{tpu_custom_call.1} parent=1 // pred_region
      %s26 = ssub.s32 2048, 2048
      %27 = vsyncadd [#allocation7], %s26
      %s28 = sshll.u32 [#allocation6], 4
      %s29 = int_to_ptr.vmem [resolvable:$true] %s28
      %34 = dma.hbm_to_vmem [thread:$0]  %s1, 2048, %s29, [#allocation7], 128, 128, 8
    $region9: #{tpu_custom_call.1} parent=1 // pred_fallthru
      _
    // Predicated region
    $region10: #{tpu_custom_call.1} parent=1 // pred_check
      _
    $region11: #{tpu_custom_call.1} parent=1 // pred_check_branch
      %36 = sbr.rel (0) target = $region13
    $region12: #{tpu_custom_call.1} parent=1 // pred_region
      _
    $region13: #{tpu_custom_call.1} parent=1 // pred_fallthru
      _
    // Predicated region
    $region14: #{tpu_custom_call.1} parent=1 // pred_check
      _
    $region15: #{tpu_custom_call.1} parent=1 // pred_check_branch
      %38 = sbr.rel (0) target = $region17
    $region16: #{tpu_custom_call.1} parent=1 // pred_region
      %39 = dma.done [#allocation4], 3200
    $region17: #{tpu_custom_call.1} parent=1 // pred_fallthru
      _
    // Predicated region
    $region18: #{tpu_custom_call.1} parent=1 // pred_check
      _
    $region19: #{tpu_custom_call.1} parent=1 // pred_check_branch
      %41 = sbr.rel (0) target = $region21
    $region20: #{tpu_custom_call.1} parent=1 // pred_region
      %42 = dma.done [#allocation7], 2048
    $region21: #{tpu_custom_call.1} parent=1 // pred_fallthru
      _
    %p43 = scmp.eq.s32.totalorder 0, 0
    // Predicated region
    $region22: #{tpu_custom_call.1} parent=1 // pred_check
      %p44 = pneg %p43
    $region23: #{tpu_custom_call.1} parent=1 // pred_check_branch
      %46 = sbr.rel (%p44) target = $region25
    $region24: #{tpu_custom_call.1} parent=1 // pred_region
      %47 = vst [vmem:[#allocation2] sm:$0xff] 0.0
      %48 = vst [vmem:[#allocation2 + $0x8] sm:$0xff] 0.0
      %49 = vst [vmem:[#allocation2 + $0x10] sm:$0xff] 0.0
      %50 = vst [vmem:[#allocation2 + $0x18] sm:$0xff] 0.0
      %51 = vst [vmem:[#allocation2 + $0x20] sm:$0xff] 0.0
      %52 = vst [vmem:[#allocation2 + $0x28] sm:$0xff] 0.0
      %53 = vst [vmem:[#allocation2 + $0x30] sm:$0xff] 0.0
      %54 = vst [vmem:[#allocation2 + $0x38] sm:$0xff] 0.0
      %55 = vst [vmem:[#allocation2 + $0x40] sm:$0xff] 0.0
      %56 = vst [vmem:[#allocation2 + $0x48] sm:$0xff] 0.0
      %57 = vst [vmem:[#allocation2 + $0x50] sm:$0xff] 0.0
      %58 = vst [vmem:[#allocation2 + $0x58] sm:$0xff] 0.0
      %59 = vst [vmem:[#allocation2 + $0x60] sm:$0xff] 0.0
      %60 = vst [vmem:[#allocation2 + $0x68] sm:$0xff] 0.0
      %61 = vst [vmem:[#allocation2 + $0x70] sm:$0xff] 0.0
      %62 = vst [vmem:[#allocation2 + $0x78] sm:$0xff] 0.0
      %63 = vst [vmem:[#allocation2 + $0x80] sm:$0xff] 0.0
      %64 = vst [vmem:[#allocation2 + $0x88] sm:$0xff] 0.0
      %65 = vst [vmem:[#allocation2 + $0x90] sm:$0xff] 0.0
      %66 = vst [vmem:[#allocation2 + $0x98] sm:$0xff] 0.0
      %67 = vst [vmem:[#allocation2 + $0xa0] sm:$0xff] 0.0
      %68 = vst [vmem:[#allocation2 + $0xa8] sm:$0xff] 0.0
      %69 = vst [vmem:[#allocation2 + $0xb0] sm:$0xff] 0.0
      %70 = vst [vmem:[#allocation2 + $0xb8] sm:$0xff] 0.0
      %71 = vst [vmem:[#allocation2 + $0xc0] sm:$0xff] 0.0
    $region25: #{tpu_custom_call.1} parent=1 // pred_fallthru
      _
    %v72 = vld [vmem:[#allocation2] sm:$0xff]
    %v73 = vld [vmem:[#allocation2 + $0x8] sm:$0xff]
    %v74 = vld [vmem:[#allocation2 + $0x10] sm:$0xff]
    %v75 = vld [vmem:[#allocation2 + $0x18] sm:$0xff]
    %v76 = vld [vmem:[#allocation2 + $0x20] sm:$0xff]
    %v77 = vld [vmem:[#allocation2 + $0x28] sm:$0xff]
    %v78 = vld [vmem:[#allocation2 + $0x30] sm:$0xff]
    %v79 = vld [vmem:[#allocation2 + $0x38] sm:$0xff]
    %v80 = vld [vmem:[#allocation2 + $0x40] sm:$0xff]
    %v81 = vld [vmem:[#allocation2 + $0x48] sm:$0xff]
    %v82 = vld [vmem:[#allocation2 + $0x50] sm:$0xff]
    %v83 = vld [vmem:[#allocation2 + $0x58] sm:$0xff]
    %v84 = vld [vmem:[#allocation2 + $0x60] sm:$0xff]
    %v85 = vld [vmem:[#allocation2 + $0x68] sm:$0xff]
    %v86 = vld [vmem:[#allocation2 + $0x70] sm:$0xff]
    %v87 = vld [vmem:[#allocation2 + $0x78] sm:$0xff]
    %v88 = vld [vmem:[#allocation2 + $0x80] sm:$0xff]
    %v89 = vld [vmem:[#allocation2 + $0x88] sm:$0xff]
    %v90 = vld [vmem:[#allocation2 + $0x90] sm:$0xff]
    %v91 = vld [vmem:[#allocation2 + $0x98] sm:$0xff]
    %v92 = vld [vmem:[#allocation2 + $0xa0] sm:$0xff]
    %v93 = vld [vmem:[#allocation2 + $0xa8] sm:$0xff]
    %v94 = vld [vmem:[#allocation2 + $0xb0] sm:$0xff]
    %v95 = vld [vmem:[#allocation2 + $0xb8] sm:$0xff]
    %v96 = vld [vmem:[#allocation2 + $0xc0] sm:$0xff]
    %v97 = vld [vmem:[#allocation3] sm:$0xff]
    %v98 = vld [vmem:[#allocation3 + $0x8] sm:$0xff]
    %v99 = vld [vmem:[#allocation3 + $0x10] sm:$0xff]
    %v100 = vld [vmem:[#allocation3 + $0x18] sm:$0xff]
    %v101 = vld [vmem:[#allocation3 + $0x20] sm:$0xff]
    %v102 = vld [vmem:[#allocation3 + $0x28] sm:$0xff]
    %v103 = vld [vmem:[#allocation3 + $0x30] sm:$0xff]
    %v104 = vld [vmem:[#allocation3 + $0x38] sm:$0xff]
    %v105 = vld [vmem:[#allocation3 + $0x40] sm:$0xff]
    %v106 = vld [vmem:[#allocation3 + $0x48] sm:$0xff]
    %v107 = vld [vmem:[#allocation3 + $0x50] sm:$0xff]
    %v108 = vld [vmem:[#allocation3 + $0x58] sm:$0xff]
    %v109 = vld [vmem:[#allocation3 + $0x60] sm:$0xff]
    %v110 = vld [vmem:[#allocation3 + $0x68] sm:$0xff]
    %v111 = vld [vmem:[#allocation3 + $0x70] sm:$0xff]
    %v112 = vld [vmem:[#allocation3 + $0x78] sm:$0xff]
    %v113 = vld [vmem:[#allocation3 + $0x80] sm:$0xff]
    %v114 = vld [vmem:[#allocation3 + $0x88] sm:$0xff]
    %v115 = vld [vmem:[#allocation3 + $0x90] sm:$0xff]
    %v116 = vld [vmem:[#allocation3 + $0x98] sm:$0xff]
    %v117 = vld [vmem:[#allocation3 + $0xa0] sm:$0xff]
    %v118 = vld [vmem:[#allocation3 + $0xa8] sm:$0xff]
    %v119 = vld [vmem:[#allocation3 + $0xb0] sm:$0xff]
    %v120 = vld [vmem:[#allocation3 + $0xb8] sm:$0xff]
    %v121 = vld [vmem:[#allocation3 + $0xc0] sm:$0xff]
    %v122 = vld [vmem:[#allocation6] sm:$0xff]
    %v123 = vld [vmem:[#allocation6 + $0x8] sm:$0xff]
    %v124 = vld [vmem:[#allocation6 + $0x10] sm:$0xff]
    %v125 = vld [vmem:[#allocation6 + $0x18] sm:$0xff]
    %v126 = vld [vmem:[#allocation6 + $0x20] sm:$0xff]
    %v127 = vld [vmem:[#allocation6 + $0x28] sm:$0xff]
    %v128 = vld [vmem:[#allocation6 + $0x30] sm:$0xff]
    %v129 = vld [vmem:[#allocation6 + $0x38] sm:$0xff]
    %v130 = vld [vmem:[#allocation6 + $0x40] sm:$0xff]
    %v131 = vld [vmem:[#allocation6 + $0x48] sm:$0xff]
    %v132 = vld [vmem:[#allocation6 + $0x50] sm:$0xff]
    %v133 = vld [vmem:[#allocation6 + $0x58] sm:$0xff]
    %v134 = vld [vmem:[#allocation6 + $0x60] sm:$0xff]
    %v135 = vld [vmem:[#allocation6 + $0x68] sm:$0xff]
    %v136 = vld [vmem:[#allocation6 + $0x70] sm:$0xff]
    %v137 = vld [vmem:[#allocation6 + $0x78] sm:$0xff]
    %138 = vmatprep.subr.mxu0 0.0
    %139 = vmatpush1.msra.mxu0 %v137
    %140 = vmatprep.subr.mxu0 0.0
    %141 = vmatpush1.msra.mxu0 %v136
    %142 = vmatprep.subr.mxu0 0.0
    %143 = vmatpush1.msra.mxu0 %v135
    %144 = vmatprep.subr.mxu0 0.0
    %145 = vmatpush1.msra.mxu0 %v134
    %146 = vmatprep.subr.mxu0 0.0
    %147 = vmatpush1.msra.mxu0 %v133
    %148 = vmatprep.subr.mxu0 0.0
    %149 = vmatpush1.msra.mxu0 %v132
    %150 = vmatprep.subr.mxu0 0.0
    %151 = vmatpush1.msra.mxu0 %v131
    %152 = vmatprep.subr.mxu0 0.0
    %153 = vmatpush1.msra.mxu0 %v130
    %154 = vmatprep.subr.mxu0 0.0
    %155 = vmatpush1.msra.mxu0 %v129
    %156 = vmatprep.subr.mxu0 0.0
    %157 = vmatpush1.msra.mxu0 %v128
    %158 = vmatprep.subr.mxu0 0.0
    %159 = vmatpush1.msra.mxu0 %v127
    %160 = vmatprep.subr.mxu0 0.0
    %161 = vmatpush1.msra.mxu0 %v126
    %162 = vmatprep.subr.mxu0 0.0
    %163 = vmatpush1.msra.mxu0 %v125
    %164 = vmatprep.subr.mxu0 0.0
    %165 = vmatpush1.msra.mxu0 %v124
    %166 = vmatprep.subr.mxu0 0.0
    %167 = vmatpush1.msra.mxu0 %v123
    %168 = vmatprep.subr.mxu0 0.0
    %169 = vmatpush1.msra.mxu0 %v122
    %170 = vmatprep.subr.mxu0 0.0
    %171 = vmatpush2.msra.mxu0 0.0
    %172 = vmatprep.subr.mxu0 0.0
    %173 = vmatpush2.msra.mxu0 0.0
    %174 = vmatprep.subr.mxu0 0.0
    %175 = vmatpush2.msra.mxu0 0.0
    %176 = vmatprep.subr.mxu0 0.0
    %177 = vmatpush2.msra.mxu0 0.0
    %178 = vmatprep.subr.mxu0 0.0
    %179 = vmatpush2.msra.mxu0 0.0
    %180 = vmatprep.subr.mxu0 0.0
    %181 = vmatpush2.msra.mxu0 0.0
    %182 = vmatprep.subr.mxu0 0.0
    %183 = vmatpush2.msra.mxu0 0.0
    %184 = vmatprep.subr.mxu0 0.0
    %185 = vmatpush2.msra.mxu0 0.0
    %186 = vmatprep.subr.mxu0 0.0
    %187 = vmatpush2.msra.mxu0 0.0
    %188 = vmatprep.subr.mxu0 0.0
    %189 = vmatpush2.msra.mxu0 0.0
    %190 = vmatprep.subr.mxu0 0.0
    %191 = vmatpush2.msra.mxu0 0.0
    %192 = vmatprep.subr.mxu0 0.0
    %193 = vmatpush2.msra.mxu0 0.0
    %194 = vmatprep.subr.mxu0 0.0
    %195 = vmatpush2.msra.mxu0 0.0
    %196 = vmatprep.subr.mxu0 0.0
    %197 = vmatpush2.msra.mxu0 0.0
    %198 = vmatprep.subr.mxu0 0.0
    %199 = vmatpush2.msra.mxu0 0.0
    %200 = vmatprep.subr.mxu0 0.0
    %201 = vmatpush2.msra.mxu0 0.0
    %202 = vmatprep.mubr.f32.mxu0 0.0
    %203 = vmatmul.mubr.f32.gmra.mxu0 %v97
    %v204 = vpop.f32.mrf.mxu0
    %v205 = vadd.f32 0.0, %v204
    %v206 = vpop.f32.mrf.mxu0
    %207 = vmatprep.mubr.f32.mxu0 0.0
    %208 = vmatmul.mubr.f32.gmra.mxu0 %v98
    %v209 = vpop.f32.mrf.mxu0
    %v210 = vadd.f32 0.0, %v209
    %v211 = vpop.f32.mrf.mxu0
    %212 = vmatprep.mubr.f32.mxu0 0.0
    %213 = vmatmul.mubr.f32.gmra.mxu0 %v99
    %v214 = vpop.f32.mrf.mxu0
    %v215 = vadd.f32 0.0, %v214
    %v216 = vpop.f32.mrf.mxu0
    %217 = vmatprep.mubr.f32.mxu0 0.0
    %218 = vmatmul.mubr.f32.gmra.mxu0 %v100
    %v219 = vpop.f32.mrf.mxu0
    %v220 = vadd.f32 0.0, %v219
    %v221 = vpop.f32.mrf.mxu0
    %222 = vmatprep.mubr.f32.mxu0 0.0
    %223 = vmatmul.mubr.f32.gmra.mxu0 %v101
    %v224 = vpop.f32.mrf.mxu0
    %v225 = vadd.f32 0.0, %v224
    %v226 = vpop.f32.mrf.mxu0
    %227 = vmatprep.mubr.f32.mxu0 0.0
    %228 = vmatmul.mubr.f32.gmra.mxu0 %v102
    %v229 = vpop.f32.mrf.mxu0
    %v230 = vadd.f32 0.0, %v229
    %v231 = vpop.f32.mrf.mxu0
    %232 = vmatprep.mubr.f32.mxu0 0.0
    %233 = vmatmul.mubr.f32.gmra.mxu0 %v103
    %v234 = vpop.f32.mrf.mxu0
    %v235 = vadd.f32 0.0, %v234
    %v236 = vpop.f32.mrf.mxu0
    %237 = vmatprep.mubr.f32.mxu0 0.0
    %238 = vmatmul.mubr.f32.gmra.mxu0 %v104
    %v239 = vpop.f32.mrf.mxu0
    %v240 = vadd.f32 0.0, %v239
    %v241 = vpop.f32.mrf.mxu0
    %242 = vmatprep.mubr.f32.mxu0 0.0
    %243 = vmatmul.mubr.f32.gmra.mxu0 %v105
    %v244 = vpop.f32.mrf.mxu0
    %v245 = vadd.f32 0.0, %v244
    %v246 = vpop.f32.mrf.mxu0
    %247 = vmatprep.mubr.f32.mxu0 0.0
    %248 = vmatmul.mubr.f32.gmra.mxu0 %v106
    %v249 = vpop.f32.mrf.mxu0
    %v250 = vadd.f32 0.0, %v249
    %v251 = vpop.f32.mrf.mxu0
    %252 = vmatprep.mubr.f32.mxu0 0.0
    %253 = vmatmul.mubr.f32.gmra.mxu0 %v107
    %v254 = vpop.f32.mrf.mxu0
    %v255 = vadd.f32 0.0, %v254
    %v256 = vpop.f32.mrf.mxu0
    %257 = vmatprep.mubr.f32.mxu0 0.0
    %258 = vmatmul.mubr.f32.gmra.mxu0 %v108
    %v259 = vpop.f32.mrf.mxu0
    %v260 = vadd.f32 0.0, %v259
    %v261 = vpop.f32.mrf.mxu0
    %262 = vmatprep.mubr.f32.mxu0 0.0
    %263 = vmatmul.mubr.f32.gmra.mxu0 %v109
    %v264 = vpop.f32.mrf.mxu0
    %v265 = vadd.f32 0.0, %v264
    %v266 = vpop.f32.mrf.mxu0
    %267 = vmatprep.mubr.f32.mxu0 0.0
    %268 = vmatmul.mubr.f32.gmra.mxu0 %v110
    %v269 = vpop.f32.mrf.mxu0
    %v270 = vadd.f32 0.0, %v269
    %v271 = vpop.f32.mrf.mxu0
    %272 = vmatprep.mubr.f32.mxu0 0.0
    %273 = vmatmul.mubr.f32.gmra.mxu0 %v111
    %v274 = vpop.f32.mrf.mxu0
    %v275 = vadd.f32 0.0, %v274
    %v276 = vpop.f32.mrf.mxu0
    %277 = vmatprep.mubr.f32.mxu0 0.0
    %278 = vmatmul.mubr.f32.gmra.mxu0 %v112
    %v279 = vpop.f32.mrf.mxu0
    %v280 = vadd.f32 0.0, %v279
    %v281 = vpop.f32.mrf.mxu0
    %282 = vmatprep.mubr.f32.mxu0 0.0
    %283 = vmatmul.mubr.f32.gmra.mxu0 %v113
    %v284 = vpop.f32.mrf.mxu0
    %v285 = vadd.f32 0.0, %v284
    %v286 = vpop.f32.mrf.mxu0
    %287 = vmatprep.mubr.f32.mxu0 0.0
    %288 = vmatmul.mubr.f32.gmra.mxu0 %v114
    %v289 = vpop.f32.mrf.mxu0
    %v290 = vadd.f32 0.0, %v289
    %v291 = vpop.f32.mrf.mxu0
    %292 = vmatprep.mubr.f32.mxu0 0.0
    %293 = vmatmul.mubr.f32.gmra.mxu0 %v115
    %v294 = vpop.f32.mrf.mxu0
    %v295 = vadd.f32 0.0, %v294
    %v296 = vpop.f32.mrf.mxu0
    %297 = vmatprep.mubr.f32.mxu0 0.0
    %298 = vmatmul.mubr.f32.gmra.mxu0 %v116
    %v299 = vpop.f32.mrf.mxu0
    %v300 = vadd.f32 0.0, %v299
    %v301 = vpop.f32.mrf.mxu0
    %302 = vmatprep.mubr.f32.mxu0 0.0
    %303 = vmatmul.mubr.f32.gmra.mxu0 %v117
    %v304 = vpop.f32.mrf.mxu0
    %v305 = vadd.f32 0.0, %v304
    %v306 = vpop.f32.mrf.mxu0
    %307 = vmatprep.mubr.f32.mxu0 0.0
    %308 = vmatmul.mubr.f32.gmra.mxu0 %v118
    %v309 = vpop.f32.mrf.mxu0
    %v310 = vadd.f32 0.0, %v309
    %v311 = vpop.f32.mrf.mxu0
    %312 = vmatprep.mubr.f32.mxu0 0.0
    %313 = vmatmul.mubr.f32.gmra.mxu0 %v119
    %v314 = vpop.f32.mrf.mxu0
    %v315 = vadd.f32 0.0, %v314
    %v316 = vpop.f32.mrf.mxu0
    %317 = vmatprep.mubr.f32.mxu0 0.0
    %318 = vmatmul.mubr.f32.gmra.mxu0 %v120
    %v319 = vpop.f32.mrf.mxu0
    %v320 = vadd.f32 0.0, %v319
    %v321 = vpop.f32.mrf.mxu0
    %322 = vmatprep.mubr.f32.mxu0 0.0
    %323 = vmatmul.mubr.f32.gmra.mxu0 %v121
    %v324 = vpop.f32.mrf.mxu0
    %v325 = vadd.f32 0.0, %v324
    %v326 = vpop.f32.mrf.mxu0
    %327 = vdwg.mxu0
    %v328 = vadd.f32 %v72, %v205
    %v329 = vadd.f32 %v73, %v210
    %v330 = vadd.f32 %v74, %v215
    %v331 = vadd.f32 %v75, %v220
    %v332 = vadd.f32 %v76, %v225
    %v333 = vadd.f32 %v77, %v230
    %v334 = vadd.f32 %v78, %v235
    %v335 = vadd.f32 %v79, %v240
    %v336 = vadd.f32 %v80, %v245
    %v337 = vadd.f32 %v81, %v250
    %v338 = vadd.f32 %v82, %v255
    %v339 = vadd.f32 %v83, %v260
    %v340 = vadd.f32 %v84, %v265
    %v341 = vadd.f32 %v85, %v270
    %v342 = vadd.f32 %v86, %v275
    %v343 = vadd.f32 %v87, %v280
    %v344 = vadd.f32 %v88, %v285
    %v345 = vadd.f32 %v89, %v290
    %v346 = vadd.f32 %v90, %v295
    %v347 = vadd.f32 %v91, %v300
    %v348 = vadd.f32 %v92, %v305
    %v349 = vadd.f32 %v93, %v310
    %v350 = vadd.f32 %v94, %v315
    %v351 = vadd.f32 %v95, %v320
    %v352 = vadd.f32 %v96, %v325
    %353 = vst [vmem:[#allocation2] sm:$0xff] %v328
    %354 = vst [vmem:[#allocation2 + $0x8] sm:$0xff] %v329
    %355 = vst [vmem:[#allocation2 + $0x10] sm:$0xff] %v330
    %356 = vst [vmem:[#allocation2 + $0x18] sm:$0xff] %v331
    %357 = vst [vmem:[#allocation2 + $0x20] sm:$0xff] %v332
    %358 = vst [vmem:[#allocation2 + $0x28] sm:$0xff] %v333
    %359 = vst [vmem:[#allocation2 + $0x30] sm:$0xff] %v334
    %360 = vst [vmem:[#allocation2 + $0x38] sm:$0xff] %v335
    %361 = vst [vmem:[#allocation2 + $0x40] sm:$0xff] %v336
    %362 = vst [vmem:[#allocation2 + $0x48] sm:$0xff] %v337
    %363 = vst [vmem:[#allocation2 + $0x50] sm:$0xff] %v338
    %364 = vst [vmem:[#allocation2 + $0x58] sm:$0xff] %v339
    %365 = vst [vmem:[#allocation2 + $0x60] sm:$0xff] %v340
    %366 = vst [vmem:[#allocation2 + $0x68] sm:$0xff] %v341
    %367 = vst [vmem:[#allocation2 + $0x70] sm:$0xff] %v342
    %368 = vst [vmem:[#allocation2 + $0x78] sm:$0xff] %v343
    %369 = vst [vmem:[#allocation2 + $0x80] sm:$0xff] %v344
    %370 = vst [vmem:[#allocation2 + $0x88] sm:$0xff] %v345
    %371 = vst [vmem:[#allocation2 + $0x90] sm:$0xff] %v346
    %372 = vst [vmem:[#allocation2 + $0x98] sm:$0xff] %v347
    %373 = vst [vmem:[#allocation2 + $0xa0] sm:$0xff] %v348
    %374 = vst [vmem:[#allocation2 + $0xa8] sm:$0xff] %v349
    %375 = vst [vmem:[#allocation2 + $0xb0] sm:$0xff] %v350
    %376 = vst [vmem:[#allocation2 + $0xb8] sm:$0xff] %v351
    %377 = vst [vmem:[#allocation2 + $0xc0] sm:$0xff] %v352
    // Predicated region
    $region26: #{tpu_custom_call.1} parent=1 // pred_check
      %p378 = pneg %p43
    $region27: #{tpu_custom_call.1} parent=1 // pred_check_branch
      %380 = sbr.rel (%p378) target = $region29
    $region28: #{tpu_custom_call.1} parent=1 // pred_region
      %v381 = vld [vmem:[#allocation2] sm:$0xff]
      %v382 = vld [vmem:[#allocation2 + $0x8] sm:$0xff]
      %v383 = vld [vmem:[#allocation2 + $0x10] sm:$0xff]
      %v384 = vld [vmem:[#allocation2 + $0x18] sm:$0xff]
      %v385 = vld [vmem:[#allocation2 + $0x20] sm:$0xff]
      %v386 = vld [vmem:[#allocation2 + $0x28] sm:$0xff]
      %v387 = vld [vmem:[#allocation2 + $0x30] sm:$0xff]
      %v388 = vld [vmem:[#allocation2 + $0x38] sm:$0xff]
      %v389 = vld [vmem:[#allocation2 + $0x40] sm:$0xff]
      %v390 = vld [vmem:[#allocation2 + $0x48] sm:$0xff]
      %v391 = vld [vmem:[#allocation2 + $0x50] sm:$0xff]
      %v392 = vld [vmem:[#allocation2 + $0x58] sm:$0xff]
      %v393 = vld [vmem:[#allocation2 + $0x60] sm:$0xff]
      %v394 = vld [vmem:[#allocation2 + $0x68] sm:$0xff]
      %v395 = vld [vmem:[#allocation2 + $0x70] sm:$0xff]
      %v396 = vld [vmem:[#allocation2 + $0x78] sm:$0xff]
      %v397 = vld [vmem:[#allocation2 + $0x80] sm:$0xff]
      %v398 = vld [vmem:[#allocation2 + $0x88] sm:$0xff]
      %v399 = vld [vmem:[#allocation2 + $0x90] sm:$0xff]
      %v400 = vld [vmem:[#allocation2 + $0x98] sm:$0xff]
      %v401 = vld [vmem:[#allocation2 + $0xa0] sm:$0xff]
      %v402 = vld [vmem:[#allocation2 + $0xa8] sm:$0xff]
      %v403 = vld [vmem:[#allocation2 + $0xb0] sm:$0xff]
      %v404 = vld [vmem:[#allocation2 + $0xb8] sm:$0xff]
      %v405 = vld [vmem:[#allocation2 + $0xc0] sm:$0xff]
      %v406 = vld [vmem:[%s2] sm:$0x1]
      %v408 = vlaneseq
      %v409 = vshrl.u32 %v408, 7
      %v410 = vsub.s32 0, %v409
      %v411 = vrot.slane %v406, %v410
      %v413 = vadd.f32 %v381, %v411
      %v414 = vadd.f32 %v382, %v411
      %v415 = vadd.f32 %v383, %v411
      %v416 = vadd.f32 %v384, %v411
      %v417 = vadd.f32 %v385, %v411
      %v418 = vadd.f32 %v386, %v411
      %v419 = vadd.f32 %v387, %v411
      %v420 = vadd.f32 %v388, %v411
      %v421 = vadd.f32 %v389, %v411
      %v422 = vadd.f32 %v390, %v411
      %v423 = vadd.f32 %v391, %v411
      %v424 = vadd.f32 %v392, %v411
      %v425 = vadd.f32 %v393, %v411
      %v426 = vadd.f32 %v394, %v411
      %v427 = vadd.f32 %v395, %v411
      %v428 = vadd.f32 %v396, %v411
      %v429 = vadd.f32 %v397, %v411
      %v430 = vadd.f32 %v398, %v411
      %v431 = vadd.f32 %v399, %v411
      %v432 = vadd.f32 %v400, %v411
      %v433 = vadd.f32 %v401, %v411
      %v434 = vadd.f32 %v402, %v411
      %v435 = vadd.f32 %v403, %v411
      %v436 = vadd.f32 %v404, %v411
      %v437 = vadd.f32 %v405, %v411
      %438 = vst [vmem:[#allocation8] sm:$0xff] %v413
      %439 = vst [vmem:[#allocation8 + $0x8] sm:$0xff] %v414
      %440 = vst [vmem:[#allocation8 + $0x10] sm:$0xff] %v415
      %441 = vst [vmem:[#allocation8 + $0x18] sm:$0xff] %v416
      %442 = vst [vmem:[#allocation8 + $0x20] sm:$0xff] %v417
      %443 = vst [vmem:[#allocation8 + $0x28] sm:$0xff] %v418
      %444 = vst [vmem:[#allocation8 + $0x30] sm:$0xff] %v419
      %445 = vst [vmem:[#allocation8 + $0x38] sm:$0xff] %v420
      %446 = vst [vmem:[#allocation8 + $0x40] sm:$0xff] %v421
      %447 = vst [vmem:[#allocation8 + $0x48] sm:$0xff] %v422
      %448 = vst [vmem:[#allocation8 + $0x50] sm:$0xff] %v423
      %449 = vst [vmem:[#allocation8 + $0x58] sm:$0xff] %v424
      %450 = vst [vmem:[#allocation8 + $0x60] sm:$0xff] %v425
      %451 = vst [vmem:[#allocation8 + $0x68] sm:$0xff] %v426
      %452 = vst [vmem:[#allocation8 + $0x70] sm:$0xff] %v427
      %453 = vst [vmem:[#allocation8 + $0x78] sm:$0xff] %v428
      %454 = vst [vmem:[#allocation8 + $0x80] sm:$0xff] %v429
      %455 = vst [vmem:[#allocation8 + $0x88] sm:$0xff] %v430
      %456 = vst [vmem:[#allocation8 + $0x90] sm:$0xff] %v431
      %457 = vst [vmem:[#allocation8 + $0x98] sm:$0xff] %v432
      %458 = vst [vmem:[#allocation8 + $0xa0] sm:$0xff] %v433
      %459 = vst [vmem:[#allocation8 + $0xa8] sm:$0xff] %v434
      %460 = vst [vmem:[#allocation8 + $0xb0] sm:$0xff] %v435
      %461 = vst [vmem:[#allocation8 + $0xb8] sm:$0xff] %v436
      %462 = vst [vmem:[#allocation8 + $0xc0] sm:$0xff] %v437
    $region29: #{tpu_custom_call.1} parent=1 // pred_fallthru
      _
    // Predicated region
    $region30: #{tpu_custom_call.1} parent=1 // pred_check
      _
    $region31: #{tpu_custom_call.1} parent=1 // pred_check_branch
      %464 = sbr.rel (0) target = $region33
    $region32: #{tpu_custom_call.1} parent=1 // pred_region
      %s466 = ssub.s32 3200, 3200
      %467 = vsyncadd [#allocation5], %s466
      %s468 = sshll.u32 [#allocation8], 4
      %s469 = int_to_ptr.vmem [resolvable:$true] %s468
      %474 = dma.vmem_to_hbm [thread:$0]  %s469, 3200, %s3, [#allocation5], 128, 128, 8
    $region33: #{tpu_custom_call.1} parent=1 // pred_fallthru
      _
    // Predicated region
    $region34: #{tpu_custom_call.1} parent=1 // pred_check
      _
    $region35: #{tpu_custom_call.1} parent=1 // pred_check_branch
      %476 = sbr.rel (0) target = $region37
    $region36: #{tpu_custom_call.1} parent=1 // pred_region
      %477 = dma.done [#allocation5], 3200
    $region37: #{tpu_custom_call.1} parent=1 // pred_fallthru
      _
    %478 = vsyncpa [#allocation4], 1
    %479 = vsyncpa [#allocation7], 1
    %480 = vsyncpa [#allocation5], 1

// kernel: tpu_custom_call.1
$region0: #{tpu_custom_call.1}
  #allocation0 [shape = 'u32[]', space=smem, size = 0x4, offset = 0x4, fixed_abs, tag = 'smem constant byte address 0x4 - core index']
  #allocation1 [shape = 'u32[144,128]{1,0:T(1,128)}', space=vmem, size = 0x12000, scoped, tag = 'internal scratch']
  #allocation2 [shape = 'f32[200,128]{1,0:T(8,128)}', space=vmem, size = 0x19000, scoped, tag = 'scratch operand']
  %s0 = inlined_call_operand.hbm [shape: f32[200,128], index: 0, kind: input, shape index: {}]
  %s1 = inlined_call_operand.hbm [shape: f32[128,128], index: 1, kind: input, shape index: {}]
  %s2 = inlined_call_operand.vmem [shape: f32[1,128], index: 2, kind: input, shape index: {}]
  %s3 = inlined_call_operand.hbm [shape: f32[200,128], index: 3, kind: output, shape index: {}]
  %s4 = sld [smem:[#allocation0]]
  $region38: #{tpu_custom_call.1} parent=0
    _
  %s6 = ssub.s32 1, %s4
  %s7 = scalar_select 0, %s6, %s4
  $region1: #{tpu_custom_call.1} parent=0
    #allocation3 [shape = 'u8[102400]{0}', space=vmem, size = 0x19000, scoped, tag = 'input window, operand 0, single buffered']
    #allocation4 [shape = 's32[1]{0}', space=sflag, size = 0x4, scoped, tag = 'scoped memory for tpu_custom_call.1']
    #allocation5 [shape = 's32[1]{0}', space=sflag, size = 0x4, scoped, tag = 'scoped memory for tpu_custom_call.1']
    #allocation6 [shape = 'u8[65536]{0}', space=vmem, size = 0x10000, scoped, tag = 'input window, operand 1, single buffered']
    #allocation7 [shape = 's32[1]{0}', space=sflag, size = 0x4, scoped, tag = 'scoped memory for tpu_custom_call.1']
    #allocation8 [shape = 'u8[102400]{0}', space=vmem, size = 0x19000, scoped, tag = 'output window, operand 0, single buffered']
    %8 = vsyncpa [#allocation4], 0
    %9 = vsyncpa [#allocation7], 0
    %10 = vsyncpa [#allocation5], 0
    // Predicated region
    $region2: #{tpu_custom_call.1} parent=1 // pred_check
      _
    $region3: #{tpu_custom_call.1} parent=1 // pred_check_branch
      %12 = sbr.rel (0) target = $region5
    $region4: #{tpu_custom_call.1} parent=1 // pred_region
      %s14 = ssub.s32 3200, 3200
      %15 = vsyncadd [#allocation4], %s14
      %s16 = sshll.u32 [#allocation3], 4
      %s17 = int_to_ptr.vmem [resolvable:$true] %s16
      %22 = dma.hbm_to_vmem [thread:$0]  %s0, 3200, %s17, [#allocation4], 128, 128, 8
    $region5: #{tpu_custom_call.1} parent=1 // pred_fallthru
      _
    // Predicated region
    $region6: #{tpu_custom_call.1} parent=1 // pred_check
      _
    $region7: #{tpu_custom_call.1} parent=1 // pred_check_branch
      %24 = sbr.rel (0) target = $region9
    $region8: #{tpu_custom_call.1} parent=1 // pred_region
      %s26 = ssub.s32 2048, 2048
      %27 = vsyncadd [#allocation7], %s26
      %s28 = sshll.u32 [#allocation6], 4
      %s29 = int_to_ptr.vmem [resolvable:$true] %s28
      %34 = dma.hbm_to_vmem [thread:$0]  %s1, 2048, %s29, [#allocation7], 128, 128, 8
    $region9: #{tpu_custom_call.1} parent=1 // pred_fallthru
      _
    // Predicated region
    $region10: #{tpu_custom_call.1} parent=1 // pred_check
      _
    $region11: #{tpu_custom_call.1} parent=1 // pred_check_branch
      %36 = sbr.rel (0) target = $region13
    $region12: #{tpu_custom_call.1} parent=1 // pred_region
      _
    $region13: #{tpu_custom_call.1} parent=1 // pred_fallthru
      _
    // Predicated region
    $region14: #{tpu_custom_call.1} parent=1 // pred_check
      _
    $region15: #{tpu_custom_call.1} parent=1 // pred_check_branch
      %38 = sbr.rel (0) target = $region17
    $region16: #{tpu_custom_call.1} parent=1 // pred_region
      %39 = dma.done [#allocation4], 3200
    $region17: #{tpu_custom_call.1} parent=1 // pred_fallthru
      _
    // Predicated region
    $region18: #{tpu_custom_call.1} parent=1 // pred_check
      _
    $region19: #{tpu_custom_call.1} parent=1 // pred_check_branch
      %41 = sbr.rel (0) target = $region21
    $region20: #{tpu_custom_call.1} parent=1 // pred_region
      %42 = dma.done [#allocation7], 2048
    $region21: #{tpu_custom_call.1} parent=1 // pred_fallthru
      _
    %p43 = scmp.eq.s32.totalorder 0, 0
    // Predicated region
    $region22: #{tpu_custom_call.1} parent=1 // pred_check
      %p44 = pneg %p43
    $region23: #{tpu_custom_call.1} parent=1 // pred_check_branch
      %46 = sbr.rel (%p44) target = $region25
    $region24: #{tpu_custom_call.1} parent=1 // pred_region
      %47 = vst [vmem:[#allocation2] sm:$0xff] 0.0
      %48 = vst [vmem:[#allocation2 + $0x8] sm:$0xff] 0.0
      %49 = vst [vmem:[#allocation2 + $0x10] sm:$0xff] 0.0
      %50 = vst [vmem:[#allocation2 + $0x18] sm:$0xff] 0.0
      %51 = vst [vmem:[#allocation2 + $0x20] sm:$0xff] 0.0
      %52 = vst [vmem:[#allocation2 + $0x28] sm:$0xff] 0.0
      %53 = vst [vmem:[#allocation2 + $0x30] sm:$0xff] 0.0
      %54 = vst [vmem:[#allocation2 + $0x38] sm:$0xff] 0.0
      %55 = vst [vmem:[#allocation2 + $0x40] sm:$0xff] 0.0
      %56 = vst [vmem:[#allocation2 + $0x48] sm:$0xff] 0.0
      %57 = vst [vmem:[#allocation2 + $0x50] sm:$0xff] 0.0
      %58 = vst [vmem:[#allocation2 + $0x58] sm:$0xff] 0.0
      %59 = vst [vmem:[#allocation2 + $0x60] sm:$0xff] 0.0
      %60 = vst [vmem:[#allocation2 + $0x68] sm:$0xff] 0.0
      %61 = vst [vmem:[#allocation2 + $0x70] sm:$0xff] 0.0
      %62 = vst [vmem:[#allocation2 + $0x78] sm:$0xff] 0.0
      %63 = vst [vmem:[#allocation2 + $0x80] sm:$0xff] 0.0
      %64 = vst [vmem:[#allocation2 + $0x88] sm:$0xff] 0.0
      %65 = vst [vmem:[#allocation2 + $0x90] sm:$0xff] 0.0
      %66 = vst [vmem:[#allocation2 + $0x98] sm:$0xff] 0.0
      %67 = vst [vmem:[#allocation2 + $0xa0] sm:$0xff] 0.0
      %68 = vst [vmem:[#allocation2 + $0xa8] sm:$0xff] 0.0
      %69 = vst [vmem:[#allocation2 + $0xb0] sm:$0xff] 0.0
      %70 = vst [vmem:[#allocation2 + $0xb8] sm:$0xff] 0.0
      %71 = vst [vmem:[#allocation2 + $0xc0] sm:$0xff] 0.0
    $region25: #{tpu_custom_call.1} parent=1 // pred_fallthru
      _
    %v72 = vld [vmem:[#allocation2] sm:$0xff]
    %v73 = vld [vmem:[#allocation2 + $0x8] sm:$0xff]
    %v74 = vld [vmem:[#allocation2 + $0x10] sm:$0xff]
    %v75 = vld [vmem:[#allocation2 + $0x18] sm:$0xff]
    %v76 = vld [vmem:[#allocation2 + $0x20] sm:$0xff]
    %v77 = vld [vmem:[#allocation2 + $0x28] sm:$0xff]
    %v78 = vld [vmem:[#allocation2 + $0x30] sm:$0xff]
    %v79 = vld [vmem:[#allocation2 + $0x38] sm:$0xff]
    %v80 = vld [vmem:[#allocation2 + $0x40] sm:$0xff]
    %v81 = vld [vmem:[#allocation2 + $0x48] sm:$0xff]
    %v82 = vld [vmem:[#allocation2 + $0x50] sm:$0xff]
    %v83 = vld [vmem:[#allocation2 + $0x58] sm:$0xff]
    %v84 = vld [vmem:[#allocation2 + $0x60] sm:$0xff]
    %v85 = vld [vmem:[#allocation2 + $0x68] sm:$0xff]
    %v86 = vld [vmem:[#allocation2 + $0x70] sm:$0xff]
    %v87 = vld [vmem:[#allocation2 + $0x78] sm:$0xff]
    %v88 = vld [vmem:[#allocation2 + $0x80] sm:$0xff]
    %v89 = vld [vmem:[#allocation2 + $0x88] sm:$0xff]
    %v90 = vld [vmem:[#allocation2 + $0x90] sm:$0xff]
    %v91 = vld [vmem:[#allocation2 + $0x98] sm:$0xff]
    %v92 = vld [vmem:[#allocation2 + $0xa0] sm:$0xff]
    %v93 = vld [vmem:[#allocation2 + $0xa8] sm:$0xff]
    %v94 = vld [vmem:[#allocation2 + $0xb0] sm:$0xff]
    %v95 = vld [vmem:[#allocation2 + $0xb8] sm:$0xff]
    %v96 = vld [vmem:[#allocation2 + $0xc0] sm:$0xff]
    %v97 = vld [vmem:[#allocation3] sm:$0xff]
    %v98 = vld [vmem:[#allocation3 + $0x8] sm:$0xff]
    %v99 = vld [vmem:[#allocation3 + $0x10] sm:$0xff]
    %v100 = vld [vmem:[#allocation3 + $0x18] sm:$0xff]
    %v101 = vld [vmem:[#allocation3 + $0x20] sm:$0xff]
    %v102 = vld [vmem:[#allocation3 + $0x28] sm:$0xff]
    %v103 = vld [vmem:[#allocation3 + $0x30] sm:$0xff]
    %v104 = vld [vmem:[#allocation3 + $0x38] sm:$0xff]
    %v105 = vld [vmem:[#allocation3 + $0x40] sm:$0xff]
    %v106 = vld [vmem:[#allocation3 + $0x48] sm:$0xff]
    %v107 = vld [vmem:[#allocation3 + $0x50] sm:$0xff]
    %v108 = vld [vmem:[#allocation3 + $0x58] sm:$0xff]
    %v109 = vld [vmem:[#allocation3 + $0x60] sm:$0xff]
    %v110 = vld [vmem:[#allocation3 + $0x68] sm:$0xff]
    %v111 = vld [vmem:[#allocation3 + $0x70] sm:$0xff]
    %v112 = vld [vmem:[#allocation3 + $0x78] sm:$0xff]
    %v113 = vld [vmem:[#allocation3 + $0x80] sm:$0xff]
    %v114 = vld [vmem:[#allocation3 + $0x88] sm:$0xff]
    %v115 = vld [vmem:[#allocation3 + $0x90] sm:$0xff]
    %v116 = vld [vmem:[#allocation3 + $0x98] sm:$0xff]
    %v117 = vld [vmem:[#allocation3 + $0xa0] sm:$0xff]
    %v118 = vld [vmem:[#allocation3 + $0xa8] sm:$0xff]
    %v119 = vld [vmem:[#allocation3 + $0xb0] sm:$0xff]
    %v120 = vld [vmem:[#allocation3 + $0xb8] sm:$0xff]
    %v121 = vld [vmem:[#allocation3 + $0xc0] sm:$0xff]
    %v122 = vld [vmem:[#allocation6] sm:$0xff]
    %v123 = vld [vmem:[#allocation6 + $0x8] sm:$0xff]
    %v124 = vld [vmem:[#allocation6 + $0x10] sm:$0xff]
    %v125 = vld [vmem:[#allocation6 + $0x18] sm:$0xff]
    %v126 = vld [vmem:[#allocation6 + $0x20] sm:$0xff]
    %v127 = vld [vmem:[#allocation6 + $0x28] sm:$0xff]
    %v128 = vld [vmem:[#allocation6 + $0x30] sm:$0xff]
    %v129 = vld [vmem:[#allocation6 + $0x38] sm:$0xff]
    %v130 = vld [vmem:[#allocation6 + $0x40] sm:$0xff]
    %v131 = vld [vmem:[#allocation6 + $0x48] sm:$0xff]
    %v132 = vld [vmem:[#allocation6 + $0x50] sm:$0xff]
    %v133 = vld [vmem:[#allocation6 + $0x58] sm:$0xff]
    %v134 = vld [vmem:[#allocation6 + $0x60] sm:$0xff]
    %v135 = vld [vmem:[#allocation6 + $0x68] sm:$0xff]
    %v136 = vld [vmem:[#allocation6 + $0x70] sm:$0xff]
    %v137 = vld [vmem:[#allocation6 + $0x78] sm:$0xff]
    %138 = vmatprep.subr.mxu0 0.0
    %139 = vmatpush1.msra.mxu0 %v137
    %140 = vmatprep.subr.mxu0 0.0
    %141 = vmatpush1.msra.mxu0 %v136
    %142 = vmatprep.subr.mxu0 0.0
    %143 = vmatpush1.msra.mxu0 %v135
    %144 = vmatprep.subr.mxu0 0.0
    %145 = vmatpush1.msra.mxu0 %v134
    %146 = vmatprep.subr.mxu0 0.0
    %147 = vmatpush1.msra.mxu0 %v133
    %148 = vmatprep.subr.mxu0 0.0
    %149 = vmatpush1.msra.mxu0 %v132
    %150 = vmatprep.subr.mxu0 0.0
    %151 = vmatpush1.msra.mxu0 %v131
    %152 = vmatprep.subr.mxu0 0.0
    %153 = vmatpush1.msra.mxu0 %v130
    %154 = vmatprep.subr.mxu0 0.0
    %155 = vmatpush1.msra.mxu0 %v129
    %156 = vmatprep.subr.mxu0 0.0
    %157 = vmatpush1.msra.mxu0 %v128
    %158 = vmatprep.subr.mxu0 0.0
    %159 = vmatpush1.msra.mxu0 %v127
    %160 = vmatprep.subr.mxu0 0.0
    %161 = vmatpush1.msra.mxu0 %v126
    %162 = vmatprep.subr.mxu0 0.0
    %163 = vmatpush1.msra.mxu0 %v125
    %164 = vmatprep.subr.mxu0 0.0
    %165 = vmatpush1.msra.mxu0 %v124
    %166 = vmatprep.subr.mxu0 0.0
    %167 = vmatpush1.msra.mxu0 %v123
    %168 = vmatprep.subr.mxu0 0.0
    %169 = vmatpush1.msra.mxu0 %v122
    %170 = vmatprep.subr.mxu0 0.0
    %171 = vmatpush2.msra.mxu0 0.0
    %172 = vmatprep.subr.mxu0 0.0
    %173 = vmatpush2.msra.mxu0 0.0
    %174 = vmatprep.subr.mxu0 0.0
    %175 = vmatpush2.msra.mxu0 0.0
    %176 = vmatprep.subr.mxu0 0.0
    %177 = vmatpush2.msra.mxu0 0.0
    %178 = vmatprep.subr.mxu0 0.0
    %179 = vmatpush2.msra.mxu0 0.0
    %180 = vmatprep.subr.mxu0 0.0
    %181 = vmatpush2.msra.mxu0 0.0
    %182 = vmatprep.subr.mxu0 0.0
    %183 = vmatpush2.msra.mxu0 0.0
    %184 = vmatprep.subr.mxu0 0.0
    %185 = vmatpush2.msra.mxu0 0.0
    %186 = vmatprep.subr.mxu0 0.0
    %187 = vmatpush2.msra.mxu0 0.0
    %188 = vmatprep.subr.mxu0 0.0
    %189 = vmatpush2.msra.mxu0 0.0
    %190 = vmatprep.subr.mxu0 0.0
    %191 = vmatpush2.msra.mxu0 0.0
    %192 = vmatprep.subr.mxu0 0.0
    %193 = vmatpush2.msra.mxu0 0.0
    %194 = vmatprep.subr.mxu0 0.0
    %195 = vmatpush2.msra.mxu0 0.0
    %196 = vmatprep.subr.mxu0 0.0
    %197 = vmatpush2.msra.mxu0 0.0
    %198 = vmatprep.subr.mxu0 0.0
    %199 = vmatpush2.msra.mxu0 0.0
    %200 = vmatprep.subr.mxu0 0.0
    %201 = vmatpush2.msra.mxu0 0.0
    %202 = vmatprep.mubr.f32.mxu0 0.0
    %203 = vmatmul.mubr.f32.gmra.mxu0 %v97
    %v204 = vpop.f32.mrf.mxu0
    %v205 = vadd.f32 0.0, %v204
    %v206 = vpop.f32.mrf.mxu0
    %207 = vmatprep.mubr.f32.mxu0 0.0
    %208 = vmatmul.mubr.f32.gmra.mxu0 %v98
    %v209 = vpop.f32.mrf.mxu0
    %v210 = vadd.f32 0.0, %v209
    %v211 = vpop.f32.mrf.mxu0
    %212 = vmatprep.mubr.f32.mxu0 0.0
    %213 = vmatmul.mubr.f32.gmra.mxu0 %v99
    %v214 = vpop.f32.mrf.mxu0
    %v215 = vadd.f32 0.0, %v214
    %v216 = vpop.f32.mrf.mxu0
    %217 = vmatprep.mubr.f32.mxu0 0.0
    %218 = vmatmul.mubr.f32.gmra.mxu0 %v100
    %v219 = vpop.f32.mrf.mxu0
    %v220 = vadd.f32 0.0, %v219
    %v221 = vpop.f32.mrf.mxu0
    %222 = vmatprep.mubr.f32.mxu0 0.0
    %223 = vmatmul.mubr.f32.gmra.mxu0 %v101
    %v224 = vpop.f32.mrf.mxu0
    %v225 = vadd.f32 0.0, %v224
    %v226 = vpop.f32.mrf.mxu0
    %227 = vmatprep.mubr.f32.mxu0 0.0
    %228 = vmatmul.mubr.f32.gmra.mxu0 %v102
    %v229 = vpop.f32.mrf.mxu0
    %v230 = vadd.f32 0.0, %v229
    %v231 = vpop.f32.mrf.mxu0
    %232 = vmatprep.mubr.f32.mxu0 0.0
    %233 = vmatmul.mubr.f32.gmra.mxu0 %v103
    %v234 = vpop.f32.mrf.mxu0
    %v235 = vadd.f32 0.0, %v234
    %v236 = vpop.f32.mrf.mxu0
    %237 = vmatprep.mubr.f32.mxu0 0.0
    %238 = vmatmul.mubr.f32.gmra.mxu0 %v104
    %v239 = vpop.f32.mrf.mxu0
    %v240 = vadd.f32 0.0, %v239
    %v241 = vpop.f32.mrf.mxu0
    %242 = vmatprep.mubr.f32.mxu0 0.0
    %243 = vmatmul.mubr.f32.gmra.mxu0 %v105
    %v244 = vpop.f32.mrf.mxu0
    %v245 = vadd.f32 0.0, %v244
    %v246 = vpop.f32.mrf.mxu0
    %247 = vmatprep.mubr.f32.mxu0 0.0
    %248 = vmatmul.mubr.f32.gmra.mxu0 %v106
    %v249 = vpop.f32.mrf.mxu0
    %v250 = vadd.f32 0.0, %v249
    %v251 = vpop.f32.mrf.mxu0
    %252 = vmatprep.mubr.f32.mxu0 0.0
    %253 = vmatmul.mubr.f32.gmra.mxu0 %v107
    %v254 = vpop.f32.mrf.mxu0
    %v255 = vadd.f32 0.0, %v254
    %v256 = vpop.f32.mrf.mxu0
    %257 = vmatprep.mubr.f32.mxu0 0.0
    %258 = vmatmul.mubr.f32.gmra.mxu0 %v108
    %v259 = vpop.f32.mrf.mxu0
    %v260 = vadd.f32 0.0, %v259
    %v261 = vpop.f32.mrf.mxu0
    %262 = vmatprep.mubr.f32.mxu0 0.0
    %263 = vmatmul.mubr.f32.gmra.mxu0 %v109
    %v264 = vpop.f32.mrf.mxu0
    %v265 = vadd.f32 0.0, %v264
    %v266 = vpop.f32.mrf.mxu0
    %267 = vmatprep.mubr.f32.mxu0 0.0
    %268 = vmatmul.mubr.f32.gmra.mxu0 %v110
    %v269 = vpop.f32.mrf.mxu0
    %v270 = vadd.f32 0.0, %v269
    %v271 = vpop.f32.mrf.mxu0
    %272 = vmatprep.mubr.f32.mxu0 0.0
    %273 = vmatmul.mubr.f32.gmra.mxu0 %v111
    %v274 = vpop.f32.mrf.mxu0
    %v275 = vadd.f32 0.0, %v274
    %v276 = vpop.f32.mrf.mxu0
    %277 = vmatprep.mubr.f32.mxu0 0.0
    %278 = vmatmul.mubr.f32.gmra.mxu0 %v112
    %v279 = vpop.f32.mrf.mxu0
    %v280 = vadd.f32 0.0, %v279
    %v281 = vpop.f32.mrf.mxu0
    %282 = vmatprep.mubr.f32.mxu0 0.0
    %283 = vmatmul.mubr.f32.gmra.mxu0 %v113
    %v284 = vpop.f32.mrf.mxu0
    %v285 = vadd.f32 0.0, %v284
    %v286 = vpop.f32.mrf.mxu0
    %287 = vmatprep.mubr.f32.mxu0 0.0
    %288 = vmatmul.mubr.f32.gmra.mxu0 %v114
    %v289 = vpop.f32.mrf.mxu0
    %v290 = vadd.f32 0.0, %v289
    %v291 = vpop.f32.mrf.mxu0
    %292 = vmatprep.mubr.f32.mxu0 0.0
    %293 = vmatmul.mubr.f32.gmra.mxu0 %v115
    %v294 = vpop.f32.mrf.mxu0
    %v295 = vadd.f32 0.0, %v294
    %v296 = vpop.f32.mrf.mxu0
    %297 = vmatprep.mubr.f32.mxu0 0.0
    %298 = vmatmul.mubr.f32.gmra.mxu0 %v116
    %v299 = vpop.f32.mrf.mxu0
    %v300 = vadd.f32 0.0, %v299
    %v301 = vpop.f32.mrf.mxu0
    %302 = vmatprep.mubr.f32.mxu0 0.0
    %303 = vmatmul.mubr.f32.gmra.mxu0 %v117
    %v304 = vpop.f32.mrf.mxu0
    %v305 = vadd.f32 0.0, %v304
    %v306 = vpop.f32.mrf.mxu0
    %307 = vmatprep.mubr.f32.mxu0 0.0
    %308 = vmatmul.mubr.f32.gmra.mxu0 %v118
    %v309 = vpop.f32.mrf.mxu0
    %v310 = vadd.f32 0.0, %v309
    %v311 = vpop.f32.mrf.mxu0
    %312 = vmatprep.mubr.f32.mxu0 0.0
    %313 = vmatmul.mubr.f32.gmra.mxu0 %v119
    %v314 = vpop.f32.mrf.mxu0
    %v315 = vadd.f32 0.0, %v314
    %v316 = vpop.f32.mrf.mxu0
    %317 = vmatprep.mubr.f32.mxu0 0.0
    %318 = vmatmul.mubr.f32.gmra.mxu0 %v120
    %v319 = vpop.f32.mrf.mxu0
    %v320 = vadd.f32 0.0, %v319
    %v321 = vpop.f32.mrf.mxu0
    %322 = vmatprep.mubr.f32.mxu0 0.0
    %323 = vmatmul.mubr.f32.gmra.mxu0 %v121
    %v324 = vpop.f32.mrf.mxu0
    %v325 = vadd.f32 0.0, %v324
    %v326 = vpop.f32.mrf.mxu0
    %327 = vdwg.mxu0
    %v328 = vadd.f32 %v72, %v205
    %v329 = vadd.f32 %v73, %v210
    %v330 = vadd.f32 %v74, %v215
    %v331 = vadd.f32 %v75, %v220
    %v332 = vadd.f32 %v76, %v225
    %v333 = vadd.f32 %v77, %v230
    %v334 = vadd.f32 %v78, %v235
    %v335 = vadd.f32 %v79, %v240
    %v336 = vadd.f32 %v80, %v245
    %v337 = vadd.f32 %v81, %v250
    %v338 = vadd.f32 %v82, %v255
    %v339 = vadd.f32 %v83, %v260
    %v340 = vadd.f32 %v84, %v265
    %v341 = vadd.f32 %v85, %v270
    %v342 = vadd.f32 %v86, %v275
    %v343 = vadd.f32 %v87, %v280
    %v344 = vadd.f32 %v88, %v285
    %v345 = vadd.f32 %v89, %v290
    %v346 = vadd.f32 %v90, %v295
    %v347 = vadd.f32 %v91, %v300
    %v348 = vadd.f32 %v92, %v305
    %v349 = vadd.f32 %v93, %v310
    %v350 = vadd.f32 %v94, %v315
    %v351 = vadd.f32 %v95, %v320
    %v352 = vadd.f32 %v96, %v325
    %353 = vst [vmem:[#allocation2] sm:$0xff] %v328
    %354 = vst [vmem:[#allocation2 + $0x8] sm:$0xff] %v329
    %355 = vst [vmem:[#allocation2 + $0x10] sm:$0xff] %v330
    %356 = vst [vmem:[#allocation2 + $0x18] sm:$0xff] %v331
    %357 = vst [vmem:[#allocation2 + $0x20] sm:$0xff] %v332
    %358 = vst [vmem:[#allocation2 + $0x28] sm:$0xff] %v333
    %359 = vst [vmem:[#allocation2 + $0x30] sm:$0xff] %v334
    %360 = vst [vmem:[#allocation2 + $0x38] sm:$0xff] %v335
    %361 = vst [vmem:[#allocation2 + $0x40] sm:$0xff] %v336
    %362 = vst [vmem:[#allocation2 + $0x48] sm:$0xff] %v337
    %363 = vst [vmem:[#allocation2 + $0x50] sm:$0xff] %v338
    %364 = vst [vmem:[#allocation2 + $0x58] sm:$0xff] %v339
    %365 = vst [vmem:[#allocation2 + $0x60] sm:$0xff] %v340
    %366 = vst [vmem:[#allocation2 + $0x68] sm:$0xff] %v341
    %367 = vst [vmem:[#allocation2 + $0x70] sm:$0xff] %v342
    %368 = vst [vmem:[#allocation2 + $0x78] sm:$0xff] %v343
    %369 = vst [vmem:[#allocation2 + $0x80] sm:$0xff] %v344
    %370 = vst [vmem:[#allocation2 + $0x88] sm:$0xff] %v345
    %371 = vst [vmem:[#allocation2 + $0x90] sm:$0xff] %v346
    %372 = vst [vmem:[#allocation2 + $0x98] sm:$0xff] %v347
    %373 = vst [vmem:[#allocation2 + $0xa0] sm:$0xff] %v348
    %374 = vst [vmem:[#allocation2 + $0xa8] sm:$0xff] %v349
    %375 = vst [vmem:[#allocation2 + $0xb0] sm:$0xff] %v350
    %376 = vst [vmem:[#allocation2 + $0xb8] sm:$0xff] %v351
    %377 = vst [vmem:[#allocation2 + $0xc0] sm:$0xff] %v352
    // Predicated region
    $region26: #{tpu_custom_call.1} parent=1 // pred_check
      %p378 = pneg %p43
    $region27: #{tpu_custom_call.1} parent=1 // pred_check_branch
      %380 = sbr.rel (%p378) target = $region29
    $region28: #{tpu_custom_call.1} parent=1 // pred_region
      %v381 = vld [vmem:[#allocation2] sm:$0xff]
      %v382 = vld [vmem:[#allocation2 + $0x8] sm:$0xff]
      %v383 = vld [vmem:[#allocation2 + $0x10] sm:$0xff]
      %v384 = vld [vmem:[#allocation2 + $0x18] sm:$0xff]
      %v385 = vld [vmem:[#allocation2 + $0x20] sm:$0xff]
      %v386 = vld [vmem:[#allocation2 + $0x28] sm:$0xff]
      %v387 = vld [vmem:[#allocation2 + $0x30] sm:$0xff]
      %v388 = vld [vmem:[#allocation2 + $0x38] sm:$0xff]
      %v389 = vld [vmem:[#allocation2 + $0x40] sm:$0xff]
      %v390 = vld [vmem:[#allocation2 + $0x48] sm:$0xff]
      %v391 = vld [vmem:[#allocation2 + $0x50] sm:$0xff]
      %v392 = vld [vmem:[#allocation2 + $0x58] sm:$0xff]
      %v393 = vld [vmem:[#allocation2 + $0x60] sm:$0xff]
      %v394 = vld [vmem:[#allocation2 + $0x68] sm:$0xff]
      %v395 = vld [vmem:[#allocation2 + $0x70] sm:$0xff]
      %v396 = vld [vmem:[#allocation2 + $0x78] sm:$0xff]
      %v397 = vld [vmem:[#allocation2 + $0x80] sm:$0xff]
      %v398 = vld [vmem:[#allocation2 + $0x88] sm:$0xff]
      %v399 = vld [vmem:[#allocation2 + $0x90] sm:$0xff]
      %v400 = vld [vmem:[#allocation2 + $0x98] sm:$0xff]
      %v401 = vld [vmem:[#allocation2 + $0xa0] sm:$0xff]
      %v402 = vld [vmem:[#allocation2 + $0xa8] sm:$0xff]
      %v403 = vld [vmem:[#allocation2 + $0xb0] sm:$0xff]
      %v404 = vld [vmem:[#allocation2 + $0xb8] sm:$0xff]
      %v405 = vld [vmem:[#allocation2 + $0xc0] sm:$0xff]
      %v406 = vld [vmem:[%s2] sm:$0x1]
      %v408 = vlaneseq
      %v409 = vshrl.u32 %v408, 7
      %v410 = vsub.s32 0, %v409
      %v411 = vrot.slane %v406, %v410
      %v413 = vadd.f32 %v381, %v411
      %v414 = vadd.f32 %v382, %v411
      %v415 = vadd.f32 %v383, %v411
      %v416 = vadd.f32 %v384, %v411
      %v417 = vadd.f32 %v385, %v411
      %v418 = vadd.f32 %v386, %v411
      %v419 = vadd.f32 %v387, %v411
      %v420 = vadd.f32 %v388, %v411
      %v421 = vadd.f32 %v389, %v411
      %v422 = vadd.f32 %v390, %v411
      %v423 = vadd.f32 %v391, %v411
      %v424 = vadd.f32 %v392, %v411
      %v425 = vadd.f32 %v393, %v411
      %v426 = vadd.f32 %v394, %v411
      %v427 = vadd.f32 %v395, %v411
      %v428 = vadd.f32 %v396, %v411
      %v429 = vadd.f32 %v397, %v411
      %v430 = vadd.f32 %v398, %v411
      %v431 = vadd.f32 %v399, %v411
      %v432 = vadd.f32 %v400, %v411
      %v433 = vadd.f32 %v401, %v411
      %v434 = vadd.f32 %v402, %v411
      %v435 = vadd.f32 %v403, %v411
      %v436 = vadd.f32 %v404, %v411
      %v437 = vadd.f32 %v405, %v411
      %438 = vst [vmem:[#allocation8] sm:$0xff] %v413
      %439 = vst [vmem:[#allocation8 + $0x8] sm:$0xff] %v414
      %440 = vst [vmem:[#allocation8 + $0x10] sm:$0xff] %v415
      %441 = vst [vmem:[#allocation8 + $0x18] sm:$0xff] %v416
      %442 = vst [vmem:[#allocation8 + $0x20] sm:$0xff] %v417
      %443 = vst [vmem:[#allocation8 + $0x28] sm:$0xff] %v418
      %444 = vst [vmem:[#allocation8 + $0x30] sm:$0xff] %v419
      %445 = vst [vmem:[#allocation8 + $0x38] sm:$0xff] %v420
      %446 = vst [vmem:[#allocation8 + $0x40] sm:$0xff] %v421
      %447 = vst [vmem:[#allocation8 + $0x48] sm:$0xff] %v422
      %448 = vst [vmem:[#allocation8 + $0x50] sm:$0xff] %v423
      %449 = vst [vmem:[#allocation8 + $0x58] sm:$0xff] %v424
      %450 = vst [vmem:[#allocation8 + $0x60] sm:$0xff] %v425
      %451 = vst [vmem:[#allocation8 + $0x68] sm:$0xff] %v426
      %452 = vst [vmem:[#allocation8 + $0x70] sm:$0xff] %v427
      %453 = vst [vmem:[#allocation8 + $0x78] sm:$0xff] %v428
      %454 = vst [vmem:[#allocation8 + $0x80] sm:$0xff] %v429
      %455 = vst [vmem:[#allocation8 + $0x88] sm:$0xff] %v430
      %456 = vst [vmem:[#allocation8 + $0x90] sm:$0xff] %v431
      %457 = vst [vmem:[#allocation8 + $0x98] sm:$0xff] %v432
      %458 = vst [vmem:[#allocation8 + $0xa0] sm:$0xff] %v433
      %459 = vst [vmem:[#allocation8 + $0xa8] sm:$0xff] %v434
      %460 = vst [vmem:[#allocation8 + $0xb0] sm:$0xff] %v435
      %461 = vst [vmem:[#allocation8 + $0xb8] sm:$0xff] %v436
      %462 = vst [vmem:[#allocation8 + $0xc0] sm:$0xff] %v437
    $region29: #{tpu_custom_call.1} parent=1 // pred_fallthru
      _
    // Predicated region
    $region30: #{tpu_custom_call.1} parent=1 // pred_check
      _
    $region31: #{tpu_custom_call.1} parent=1 // pred_check_branch
      %464 = sbr.rel (0) target = $region33
    $region32: #{tpu_custom_call.1} parent=1 // pred_region
      %s466 = ssub.s32 3200, 3200
      %467 = vsyncadd [#allocation5], %s466
      %s468 = sshll.u32 [#allocation8], 4
      %s469 = int_to_ptr.vmem [resolvable:$true] %s468
      %474 = dma.vmem_to_hbm [thread:$0]  %s469, 3200, %s3, [#allocation5], 128, 128, 8
    $region33: #{tpu_custom_call.1} parent=1 // pred_fallthru
      _
    // Predicated region
    $region34: #{tpu_custom_call.1} parent=1 // pred_check
      _
    $region35: #{tpu_custom_call.1} parent=1 // pred_check_branch
      %476 = sbr.rel (0) target = $region37
    $region36: #{tpu_custom_call.1} parent=1 // pred_region
      %477 = dma.done [#allocation5], 3200
    $region37: #{tpu_custom_call.1} parent=1 // pred_fallthru
      _
    %478 = vsyncpa [#allocation4], 1
    %479 = vsyncpa [#allocation7], 1
    %480 = vsyncpa [#allocation5], 1

</llo_original>
